<compile_context>
chip_gen: v7x
topology: tpu7x:2x2x1
jax: 0.10.0
libtpu: 0.0.40
codegen_flags: <defaults>
</compile_context>

<pallas_src>
import jax
import jax.numpy as jnp
from jax.experimental import pallas as pl
from jax.experimental.pallas import tpu as pltpu

LANE = 128
NEG = -1e30  # logit bias for padded action lanes (exp underflows to 0)


def _round_up(n, m):
    return ((n + m - 1) // m) * m


def _tiny_model_kernel(x_ref, w1_ref, b1_ref, w2_ref, b2_ref, w3_ref, b3_ref, o_ref):
    x = x_ref[...]

    # linear1 + sigmoid
    h1 = jnp.dot(x, w1_ref[...], preferred_element_type=jnp.float32) + b1_ref[...]
    h1 = jax.nn.sigmoid(h1)

    # linear2 + sigmoid
    h2 = jnp.dot(h1, w2_ref[...], preferred_element_type=jnp.float32) + b2_ref[...]
    h2 = jax.nn.sigmoid(h2)

    # linear4 (output head); padded action lanes carry -1e30 bias
    logits = jnp.dot(h2, w3_ref[...], preferred_element_type=jnp.float32) + b3_ref[...]

    # LogSoftmax over last dim (numerically stable; pad lanes contribute exp(...)=0)
    m = jnp.max(logits, axis=-1, keepdims=True)
    shifted = logits - m
    lse = jnp.log(jnp.sum(jnp.exp(shifted), axis=-1, keepdims=True))
    o_ref[...] = shifted - lse


def pad_params(params):
    """Pad hidden/action dims up to multiples of 128 lanes. Exact (see header)."""
    w1, b1 = params["w1"], params["b1"]
    w2, b2 = params["w2"], params["b2"]
    w3, b3 = params["w3"], params["b3"]
    _, h1 = w1.shape
    _, h2 = w2.shape
    _, na = w3.shape
    h1p, h2p, nap = _round_up(h1, LANE), _round_up(h2, LANE), _round_up(na, LANE)
    return dict(
        w1=jnp.pad(w1, ((0, 0), (0, h1p - h1))),
        b1=jnp.pad(b1, ((0, 0), (0, h1p - h1))),
        w2=jnp.pad(w2, ((0, h1p - h1), (0, h2p - h2))),
        b2=jnp.pad(b2, ((0, 0), (0, h2p - h2))),
        w3=jnp.pad(w3, ((0, h2p - h2), (0, nap - na))),
        b3=jnp.pad(b3, ((0, 0), (0, nap - na)), constant_values=NEG),
        n_actions=na,
    )


def tiny_model_forward(x, padded_params, *, block_rows=256):
    """x: (B, input_dim) f32. padded_params: output of pad_params()."""
    w1, b1 = padded_params["w1"], padded_params["b1"]
    w2, b2 = padded_params["w2"], padded_params["b2"]
    w3, b3 = padded_params["w3"], padded_params["b3"]
    n_actions = padded_params["n_actions"]

    B, din = x.shape
    assert din == w1.shape[0], "input_dim mismatch"
    assert block_rows % 8 == 0, "block_rows must be a multiple of 8"
    nap = w3.shape[1]

    # Row tile: up to block_rows (256 fills the v6e/v7x MXU), shrinks for small B.
    tb = min(block_rows, _round_up(B, 8))
    bp = _round_up(B, tb)
    if bp != B:
        x = jnp.pad(x, ((0, bp - B), (0, 0)))

    # Weights/biases: full blocks, constant index_map -> resident in VMEM across
    # all grid steps (DMA'd once).
    const = lambda a: pl.BlockSpec(a.shape, lambda i: (0,) * a.ndim)

    out = pl.pallas_call(
        _tiny_model_kernel,
        out_shape=jax.ShapeDtypeStruct((bp, nap), jnp.float32),
        grid=(bp // tb,),
        in_specs=[
            pl.BlockSpec((tb, din), lambda i: (i, 0)),
            const(w1), const(b1), const(w2), const(b2), const(w3), const(b3),
        ],
        out_specs=pl.BlockSpec((tb, nap), lambda i: (i, 0)),
        compiler_params=pltpu.CompilerParams(dimension_semantics=("parallel",)),
    )(x, w1, b1, w2, b2, w3, b3)

    return out[:B, :n_actions]


def init_params(key, input_dim, n_actions, n_neurons=(100, 100)):
    """torch.nn.Linear-style init (U(-1/sqrt(fan_in), 1/sqrt(fan_in))).
    Weights stored transposed: (in_features, out_features)."""
    dims = [(input_dim, n_neurons[0]), (n_neurons[0], n_neurons[1]), (n_neurons[1], n_actions)]
    params = {}
    keys = jax.random.split(key, 2 * len(dims))
    for i, (fan_in, fan_out) in enumerate(dims):
        bound = 1.0 / jnp.sqrt(jnp.float32(fan_in))
        params[f"w{i + 1}"] = jax.random.uniform(
            keys[2 * i], (fan_in, fan_out), jnp.float32, -bound, bound)
        params[f"b{i + 1}"] = jax.random.uniform(
            keys[2 * i + 1], (1, fan_out), jnp.float32, -bound, bound)
    return params


def reference_forward(x, params):
    h1 = jax.nn.sigmoid(x @ params["w1"] + params["b1"])
    h2 = jax.nn.sigmoid(h1 @ params["w2"] + params["b2"])
    logits = h2 @ params["w3"] + params["b3"]
    return jax.nn.log_softmax(logits, axis=-1)


if __name__ == "__main__":
    key = jax.random.PRNGKey(0)
    k_x, k_p, k_x2 = jax.random.split(key, 3)

    batch = 8
    input_dim = 16
    n_actions = 8
    n_neurons = (100, 100)  # module default

    params = init_params(k_p, input_dim, n_actions, n_neurons)
    padded = pad_params(params)

    # Small-shape run.
    x = jax.random.normal(k_x, (batch, input_dim), jnp.float32)
    out = jax.block_until_ready(tiny_model_forward(x, padded))
    ref = jax.block_until_ready(reference_forward(x, params))
    assert out.shape == (batch, n_actions)
    assert jnp.allclose(out, ref, atol=1e-5, rtol=1e-5), "mismatch vs reference (single tile)"

    # Multi-tile grid path (batch padding + >1 grid step, weights stay resident).
    x2 = jax.random.normal(k_x2, (40, input_dim), jnp.float32)
    out2 = jax.block_until_ready(tiny_model_forward(x2, padded, block_rows=16))
    ref2 = reference_forward(x2, params)
    assert out2.shape == (40, n_actions)
    assert jnp.allclose(out2, ref2, atol=1e-5, rtol=1e-5), "mismatch vs reference (multi tile)"

    print("KERNEL_OK")
</pallas_src>

<mosaic_0001>
module attributes {stable_mosaic.version = 11 : i64} {
  func.func @_tiny_model_kernel(%arg0: i32, %arg1: memref<8x16xf32, #tpu.memory_space<vmem>>, %arg2: memref<16x128xf32, #tpu.memory_space<vmem>>, %arg3: memref<1x128xf32, #tpu.memory_space<vmem>>, %arg4: memref<128x128xf32, #tpu.memory_space<vmem>>, %arg5: memref<1x128xf32, #tpu.memory_space<vmem>>, %arg6: memref<128x128xf32, #tpu.memory_space<vmem>>, %arg7: memref<1x128xf32, #tpu.memory_space<vmem>>, %arg8: memref<8x128xf32, #tpu.memory_space<vmem>>) attributes {dimension_semantics = [#tpu.dimension_semantics<parallel>], iteration_bounds = array<i64: 1>, scalar_prefetch = 0 : i64, scratch_operands = 0 : i64, tpu.core_type = #tpu.core_type<tc>, window_params = [{transform_indices = @transform_0, window_bounds = array<i64: 8, 16>}, {pipeline_mode = #tpu.pipeline_mode<synchronous>, transform_indices = @transform_1, window_bounds = array<i64: 16, 128>}, {pipeline_mode = #tpu.pipeline_mode<synchronous>, transform_indices = @transform_2, window_bounds = array<i64: 1, 128>}, {pipeline_mode = #tpu.pipeline_mode<synchronous>, transform_indices = @transform_3, window_bounds = array<i64: 128, 128>}, {pipeline_mode = #tpu.pipeline_mode<synchronous>, transform_indices = @transform_4, window_bounds = array<i64: 1, 128>}, {pipeline_mode = #tpu.pipeline_mode<synchronous>, transform_indices = @transform_5, window_bounds = array<i64: 128, 128>}, {pipeline_mode = #tpu.pipeline_mode<synchronous>, transform_indices = @transform_6, window_bounds = array<i64: 1, 128>}, {transform_indices = @transform_7, window_bounds = array<i64: 8, 128>}]} {
    %c0 = arith.constant 0 : index
    %c0_0 = arith.constant 0 : index
    %0 = vector.load %arg1[%c0, %c0_0] : memref<8x16xf32, #tpu.memory_space<vmem>>, vector<8x16xf32>
    %c0_1 = arith.constant 0 : index
    %c0_2 = arith.constant 0 : index
    %1 = vector.load %arg2[%c0_1, %c0_2] : memref<16x128xf32, #tpu.memory_space<vmem>>, vector<16x128xf32>
    %cst = arith.constant dense<0.000000e+00> : vector<8x128xf32>
    %2 = tpu.matmul %0, %1, %cst {dimension_numbers = #tpu.dot_dimension_numbers<[1], [0], [0], [1], [0, 0, 1, 1], [], []>} : vector<8x16xf32>, vector<16x128xf32>, vector<8x128xf32> -> vector<8x128xf32>
    %c0_3 = arith.constant 0 : index
    %c0_4 = arith.constant 0 : index
    %3 = vector.load %arg3[%c0_3, %c0_4] : memref<1x128xf32, #tpu.memory_space<vmem>>, vector<1x128xf32>
    %4 = vector.broadcast %3 : vector<1x128xf32> to vector<8x128xf32>
    %5 = arith.addf %2, %4 : vector<8x128xf32>
    %6 = arith.negf %5 : vector<8x128xf32>
    %7 = math.exp %6 : vector<8x128xf32>
    %cst_5 = arith.constant 1.000000e+00 : f32
    %8 = vector.broadcast %cst_5 : f32 to vector<8x128xf32>
    %9 = arith.addf %8, %7 : vector<8x128xf32>
    %10 = arith.divf %8, %9 : vector<8x128xf32>
    %c0_6 = arith.constant 0 : index
    %c0_7 = arith.constant 0 : index
    %11 = vector.load %arg4[%c0_6, %c0_7] : memref<128x128xf32, #tpu.memory_space<vmem>>, vector<128x128xf32>
    %cst_8 = arith.constant dense<0.000000e+00> : vector<8x128xf32>
    %12 = tpu.matmul %10, %11, %cst_8 {dimension_numbers = #tpu.dot_dimension_numbers<[1], [0], [0], [1], [0, 0, 1, 1], [], []>} : vector<8x128xf32>, vector<128x128xf32>, vector<8x128xf32> -> vector<8x128xf32>
    %c0_9 = arith.constant 0 : index
    %c0_10 = arith.constant 0 : index
    %13 = vector.load %arg5[%c0_9, %c0_10] : memref<1x128xf32, #tpu.memory_space<vmem>>, vector<1x128xf32>
    %14 = vector.broadcast %13 : vector<1x128xf32> to vector<8x128xf32>
    %15 = arith.addf %12, %14 : vector<8x128xf32>
    %16 = arith.negf %15 : vector<8x128xf32>
    %17 = math.exp %16 : vector<8x128xf32>
    %cst_11 = arith.constant 1.000000e+00 : f32
    %18 = vector.broadcast %cst_11 : f32 to vector<8x128xf32>
    %19 = arith.addf %18, %17 : vector<8x128xf32>
    %20 = arith.divf %18, %19 : vector<8x128xf32>
    %c0_12 = arith.constant 0 : index
    %c0_13 = arith.constant 0 : index
    %21 = vector.load %arg6[%c0_12, %c0_13] : memref<128x128xf32, #tpu.memory_space<vmem>>, vector<128x128xf32>
    %cst_14 = arith.constant dense<0.000000e+00> : vector<8x128xf32>
    %22 = tpu.matmul %20, %21, %cst_14 {dimension_numbers = #tpu.dot_dimension_numbers<[1], [0], [0], [1], [0, 0, 1, 1], [], []>} : vector<8x128xf32>, vector<128x128xf32>, vector<8x128xf32> -> vector<8x128xf32>
    %c0_15 = arith.constant 0 : index
    %c0_16 = arith.constant 0 : index
    %23 = vector.load %arg7[%c0_15, %c0_16] : memref<1x128xf32, #tpu.memory_space<vmem>>, vector<1x128xf32>
    %24 = vector.broadcast %23 : vector<1x128xf32> to vector<8x128xf32>
    %25 = arith.addf %22, %24 : vector<8x128xf32>
    %cst_17 = arith.constant dense<0xFF800000> : vector<8xf32>
    %26 = vector.multi_reduction <maximumf>, %25, %cst_17 [1] : vector<8x128xf32> to vector<8xf32>
    %27 = vector.shape_cast %26 : vector<8xf32> to vector<8x1xf32>
    %28 = vector.broadcast %27 : vector<8x1xf32> to vector<8x128xf32>
    %29 = arith.subf %25, %28 : vector<8x128xf32>
    %30 = math.exp %29 : vector<8x128xf32>
    %cst_18 = arith.constant dense<0.000000e+00> : vector<8xf32>
    %31 = vector.multi_reduction <add>, %30, %cst_18 [1] : vector<8x128xf32> to vector<8xf32>
    %32 = vector.shape_cast %31 : vector<8xf32> to vector<8x1xf32>
    %33 = math.log %32 : vector<8x1xf32>
    %34 = vector.broadcast %33 : vector<8x1xf32> to vector<8x128xf32>
    %35 = arith.subf %29, %34 : vector<8x128xf32>
    %c0_19 = arith.constant 0 : index
    %c0_20 = arith.constant 0 : index
    %36 = vector.load %arg8[%c0_19, %c0_20] : memref<8x128xf32, #tpu.memory_space<vmem>>, vector<8x128xf32>
    tpu.vector_store %arg8[%c0_19, %c0_20], %35 {strides = array<i32>} : memref<8x128xf32, #tpu.memory_space<vmem>>, vector<8x128xf32>,
    return
  }
  func.func @transform_0(%arg0: i32) -> (i32, i32) {
    %c0_i32 = arith.constant 0 : i32
    %c0_i32_0 = arith.constant 0 : i32
    return %arg0, %c0_i32 : i32, i32
  }
  func.func @transform_1(%arg0: i32) -> (i32, i32) {
    %c0_i32 = arith.constant 0 : i32
    %c0_i32_0 = arith.constant 0 : i32
    %c0_i32_1 = arith.constant 0 : i32
    return %c0_i32, %c0_i32_0 : i32, i32
  }
  func.func @transform_2(%arg0: i32) -> (i32, i32) {
    %c0_i32 = arith.constant 0 : i32
    %c0_i32_0 = arith.constant 0 : i32
    %c0_i32_1 = arith.constant 0 : i32
    return %c0_i32, %c0_i32_0 : i32, i32
  }
  func.func @transform_3(%arg0: i32) -> (i32, i32) {
    %c0_i32 = arith.constant 0 : i32
    %c0_i32_0 = arith.constant 0 : i32
    %c0_i32_1 = arith.constant 0 : i32
    return %c0_i32, %c0_i32_0 : i32, i32
  }
  func.func @transform_4(%arg0: i32) -> (i32, i32) {
    %c0_i32 = arith.constant 0 : i32
    %c0_i32_0 = arith.constant 0 : i32
    %c0_i32_1 = arith.constant 0 : i32
    return %c0_i32, %c0_i32_0 : i32, i32
  }
  func.func @transform_5(%arg0: i32) -> (i32, i32) {
    %c0_i32 = arith.constant 0 : i32
    %c0_i32_0 = arith.constant 0 : i32
    %c0_i32_1 = arith.constant 0 : i32
    return %c0_i32, %c0_i32_0 : i32, i32
  }
  func.func @transform_6(%arg0: i32) -> (i32, i32) {
    %c0_i32 = arith.constant 0 : i32
    %c0_i32_0 = arith.constant 0 : i32
    %c0_i32_1 = arith.constant 0 : i32
    return %c0_i32, %c0_i32_0 : i32, i32
  }
  func.func @transform_7(%arg0: i32) -> (i32, i32) {
    %c0_i32 = arith.constant 0 : i32
    %c0_i32_0 = arith.constant 0 : i32
    return %arg0, %c0_i32 : i32, i32
  }
}

</mosaic_0001>

<llo_original>
// kernel: tpu_custom_call.1
$region0: #{tpu_custom_call.1}
  #allocation0 [shape = 'u32[]', space=smem, size = 0x4, offset = 0x4, fixed_abs, tag = 'smem constant byte address 0x4 - core index']
  #allocation1 [shape = 'u32[144,128]{1,0:T(1,128)}', space=vmem, size = 0x12000, scoped, tag = 'internal scratch']
  %s0 = inlined_call_operand.hbm [shape: f32[8,16], index: 0, kind: input, shape index: {}]
  %s1 = inlined_call_operand.hbm [shape: f32[16,128], index: 1, kind: input, shape index: {}]
  %s2 = inlined_call_operand.vmem [shape: f32[1,128], index: 2, kind: input, shape index: {}]
  %s3 = inlined_call_operand.hbm [shape: f32[128,128], index: 3, kind: input, shape index: {}]
  %s4 = inlined_call_operand.vmem [shape: f32[1,128], index: 4, kind: input, shape index: {}]
  %s5 = inlined_call_operand.hbm [shape: f32[128,128], index: 5, kind: input, shape index: {}]
  %s6 = inlined_call_operand.vmem [shape: f32[1,128], index: 6, kind: input, shape index: {}]
  %s7 = inlined_call_operand.hbm [shape: f32[8,128], index: 7, kind: output, shape index: {}]
  %s8 = sld [smem:[#allocation0]]
  $region54: #{tpu_custom_call.1} parent=0
    _
  %s10 = ssub.s32 1, %s8
  %s11 = scalar_select 0, %s10, %s8
  $region1: #{tpu_custom_call.1} parent=0
    #allocation2 [shape = 'u8[4096]{0}', space=vmem, size = 0x1000, scoped, tag = 'input window, operand 0, single buffered']
    #allocation3 [shape = 's32[1]{0}', space=sflag, size = 0x4, scoped, tag = 'scoped memory for tpu_custom_call.1']
    #allocation4 [shape = 's32[1]{0}', space=sflag, size = 0x4, scoped, tag = 'scoped memory for tpu_custom_call.1']
    #allocation5 [shape = 'u8[8192]{0}', space=vmem, size = 0x2000, scoped, tag = 'input window, operand 1, single buffered']
    #allocation6 [shape = 's32[1]{0}', space=sflag, size = 0x4, scoped, tag = 'scoped memory for tpu_custom_call.1']
    #allocation7 [shape = 'u8[65536]{0}', space=vmem, size = 0x10000, scoped, tag = 'input window, operand 3, single buffered']
    #allocation8 [shape = 'u8[65536]{0}', space=vmem, size = 0x10000, scoped, tag = 'input window, operand 5, single buffered']
    #allocation9 [shape = 's32[1]{0}', space=sflag, size = 0x4, scoped, tag = 'scoped memory for tpu_custom_call.1']
    #allocation10 [shape = 'u8[4096]{0}', space=vmem, size = 0x1000, scoped, tag = 'output window, operand 0, single buffered']
    %12 = vsyncpa [#allocation3], 0
    %13 = vsyncpa [#allocation6], 0
    %14 = vsyncpa [#allocation9], 0
    %15 = vsyncpa [#allocation4], 0
    // Predicated region
    $region2: #{tpu_custom_call.1} parent=1 // pred_check
      _
    $region3: #{tpu_custom_call.1} parent=1 // pred_check_branch
      %17 = sbr.rel (0) target = $region5
    $region4: #{tpu_custom_call.1} parent=1 // pred_region
      %s19 = ssub.s32 128, 128
      %20 = vsyncadd [#allocation3], %s19
      %s22 = sshll.u32 [#allocation2], 4
      %s23 = int_to_ptr.vmem [resolvable:$true] %s22
      %25 = dma.hbm_to_vmem [thread:$0]  %s0, 128, %s23, [#allocation3]
    $region5: #{tpu_custom_call.1} parent=1 // pred_fallthru
      _
    // Predicated region
    $region6: #{tpu_custom_call.1} parent=1 // pred_check
      _
    $region7: #{tpu_custom_call.1} parent=1 // pred_check_branch
      %27 = sbr.rel (0) target = $region9
    $region8: #{tpu_custom_call.1} parent=1 // pred_region
      %s29 = ssub.s32 256, 256
      %30 = vsyncadd [#allocation6], %s29
      %s31 = sshll.u32 [#allocation5], 4
      %s32 = int_to_ptr.vmem [resolvable:$true] %s31
      %37 = dma.hbm_to_vmem [thread:$0]  %s1, 256, %s32, [#allocation6], 128, 128, 8
    $region9: #{tpu_custom_call.1} parent=1 // pred_fallthru
      _
    // Predicated region
    $region10: #{tpu_custom_call.1} parent=1 // pred_check
      _
    $region11: #{tpu_custom_call.1} parent=1 // pred_check_branch
      %39 = sbr.rel (0) target = $region13
    $region12: #{tpu_custom_call.1} parent=1 // pred_region
      _
    $region13: #{tpu_custom_call.1} parent=1 // pred_fallthru
      _
    // Predicated region
    $region14: #{tpu_custom_call.1} parent=1 // pred_check
      _
    $region15: #{tpu_custom_call.1} parent=1 // pred_check_branch
      %41 = sbr.rel (0) target = $region17
    $region16: #{tpu_custom_call.1} parent=1 // pred_region
      %s43 = ssub.s32 2048, 2048
      %44 = vsyncadd [#allocation6], %s43
      %s45 = sshll.u32 [#allocation7], 4
      %s46 = int_to_ptr.vmem [resolvable:$true] %s45
      %51 = dma.hbm_to_vmem [thread:$0]  %s3, 2048, %s46, [#allocation6], 128, 128, 8
    $region17: #{tpu_custom_call.1} parent=1 // pred_fallthru
      _
    // Predicated region
    $region18: #{tpu_custom_call.1} parent=1 // pred_check
      _
    $region19: #{tpu_custom_call.1} parent=1 // pred_check_branch
      %53 = sbr.rel (0) target = $region21
    $region20: #{tpu_custom_call.1} parent=1 // pred_region
      _
    $region21: #{tpu_custom_call.1} parent=1 // pred_fallthru
      _
    // Predicated region
    $region22: #{tpu_custom_call.1} parent=1 // pred_check
      _
    $region23: #{tpu_custom_call.1} parent=1 // pred_check_branch
      %55 = sbr.rel (0) target = $region25
    $region24: #{tpu_custom_call.1} parent=1 // pred_region
      %s57 = ssub.s32 2048, 2048
      %58 = vsyncadd [#allocation9], %s57
      %s59 = sshll.u32 [#allocation8], 4
      %s60 = int_to_ptr.vmem [resolvable:$true] %s59
      %65 = dma.hbm_to_vmem [thread:$0]  %s5, 2048, %s60, [#allocation9], 128, 128, 8
    $region25: #{tpu_custom_call.1} parent=1 // pred_fallthru
      _
    // Predicated region
    $region26: #{tpu_custom_call.1} parent=1 // pred_check
      _
    $region27: #{tpu_custom_call.1} parent=1 // pred_check_branch
      %67 = sbr.rel (0) target = $region29
    $region28: #{tpu_custom_call.1} parent=1 // pred_region
      _
    $region29: #{tpu_custom_call.1} parent=1 // pred_fallthru
      _
    // Predicated region
    $region30: #{tpu_custom_call.1} parent=1 // pred_check
      _
    $region31: #{tpu_custom_call.1} parent=1 // pred_check_branch
      %69 = sbr.rel (0) target = $region33
    $region32: #{tpu_custom_call.1} parent=1 // pred_region
      %70 = dma.done [#allocation3], 128
    $region33: #{tpu_custom_call.1} parent=1 // pred_fallthru
      _
    // Predicated region
    $region34: #{tpu_custom_call.1} parent=1 // pred_check
      _
    $region35: #{tpu_custom_call.1} parent=1 // pred_check_branch
      %72 = sbr.rel (0) target = $region37
    $region36: #{tpu_custom_call.1} parent=1 // pred_region
      %73 = dma.done [#allocation6], 256
    $region37: #{tpu_custom_call.1} parent=1 // pred_fallthru
      _
    // Predicated region
    $region38: #{tpu_custom_call.1} parent=1 // pred_check
      _
    $region39: #{tpu_custom_call.1} parent=1 // pred_check_branch
      %75 = sbr.rel (0) target = $region41
    $region40: #{tpu_custom_call.1} parent=1 // pred_region
      %76 = dma.done [#allocation6], 2048
    $region41: #{tpu_custom_call.1} parent=1 // pred_fallthru
      _
    // Predicated region
    $region42: #{tpu_custom_call.1} parent=1 // pred_check
      _
    $region43: #{tpu_custom_call.1} parent=1 // pred_check_branch
      %78 = sbr.rel (0) target = $region45
    $region44: #{tpu_custom_call.1} parent=1 // pred_region
      %79 = dma.done [#allocation9], 2048
    $region45: #{tpu_custom_call.1} parent=1 // pred_fallthru
      _
    %v80 = vld [vmem:[#allocation2] sm:$0xff]
    %v81 = vld [vmem:[#allocation5] sm:$0xff]
    %v82 = vld [vmem:[#allocation5 + $0x8] sm:$0xff]
    %v83 = vld [vmem:[%s2] sm:$0x1]
    %v85 = vlaneseq
    %v86 = vshrl.u32 %v85, 7
    %v87 = vsub.s32 0, %v86
    %v88 = vrot.slane %v83, %v87
    %vm90 = vcmask 130048
    %v92 = vsel %vm90, %v80, 0
    %94 = vmatprep.subr.mxu0 0.0
    %95 = vmatpush1.msra.mxu0 %v81
    %96 = vmatprep.subr.mxu0 0.0
    %97 = vmatpush1.msra.mxu0 %v82
    %98 = vmatprep.subr.mxu0 0.0
    %99 = vmatpush1.msra.mxu0 0.0
    %100 = vmatprep.subr.mxu0 0.0
    %101 = vmatpush1.msra.mxu0 0.0
    %102 = vmatprep.subr.mxu0 0.0
    %103 = vmatpush1.msra.mxu0 0.0
    %104 = vmatprep.subr.mxu0 0.0
    %105 = vmatpush1.msra.mxu0 0.0
    %106 = vmatprep.subr.mxu0 0.0
    %107 = vmatpush1.msra.mxu0 0.0
    %108 = vmatprep.subr.mxu0 0.0
    %109 = vmatpush1.msra.mxu0 0.0
    %110 = vmatprep.subr.mxu0 0.0
    %111 = vmatpush1.msra.mxu0 0.0
    %112 = vmatprep.subr.mxu0 0.0
    %113 = vmatpush1.msra.mxu0 0.0
    %114 = vmatprep.subr.mxu0 0.0
    %115 = vmatpush1.msra.mxu0 0.0
    %116 = vmatprep.subr.mxu0 0.0
    %117 = vmatpush1.msra.mxu0 0.0
    %118 = vmatprep.subr.mxu0 0.0
    %119 = vmatpush1.msra.mxu0 0.0
    %120 = vmatprep.subr.mxu0 0.0
    %121 = vmatpush1.msra.mxu0 0.0
    %122 = vmatprep.subr.mxu0 0.0
    %123 = vmatpush1.msra.mxu0 0.0
    %124 = vmatprep.subr.mxu0 0.0
    %125 = vmatpush1.msra.mxu0 0.0
    %126 = vmatprep.subr.mxu0 0.0
    %127 = vmatpush1.msra.mxu0 0.0
    %128 = vmatprep.subr.mxu0 0.0
    %129 = vmatpush1.msra.mxu0 0.0
    %130 = vmatprep.subr.mxu0 0.0
    %131 = vmatpush1.msra.mxu0 0.0
    %132 = vmatprep.subr.mxu0 0.0
    %133 = vmatpush1.msra.mxu0 0.0
    %134 = vmatprep.subr.mxu0 0.0
    %135 = vmatpush1.msra.mxu0 0.0
    %136 = vmatprep.subr.mxu0 0.0
    %137 = vmatpush1.msra.mxu0 0.0
    %138 = vmatprep.subr.mxu0 0.0
    %139 = vmatpush1.msra.mxu0 0.0
    %140 = vmatprep.subr.mxu0 0.0
    %141 = vmatpush1.msra.mxu0 0.0
    %142 = vmatprep.subr.mxu0 0.0
    %143 = vmatpush1.msra.mxu0 0.0
    %144 = vmatprep.subr.mxu0 0.0
    %145 = vmatpush1.msra.mxu0 0.0
    %146 = vmatprep.subr.mxu0 0.0
    %147 = vmatpush1.msra.mxu0 0.0
    %148 = vmatprep.subr.mxu0 0.0
    %149 = vmatpush1.msra.mxu0 0.0
    %150 = vmatprep.subr.mxu0 0.0
    %151 = vmatpush1.msra.mxu0 0.0
    %152 = vmatprep.subr.mxu0 0.0
    %153 = vmatpush1.msra.mxu0 0.0
    %154 = vmatprep.subr.mxu0 0.0
    %155 = vmatpush1.msra.mxu0 0.0
    %156 = vmatprep.subr.mxu0 0.0
    %157 = vmatpush1.msra.mxu0 0.0
    %158 = vmatprep.mubr.f32.mxu0 0.0
    %159 = vmatmul.mubr.f32.gmra.mrb[0].mxu0 %v92
    %v160 = vpop.f32.mrb[0].mxu0
    %v161 = vadd.f32 %v88, %v160
    %v162 = vpop.f32.mrb[0].mxu0
    %163 = vdwg.mxu0
    %v164 = vxor.u32 %v161, 2147483648
    %v165 = vmul.f32 %v164, 1.442695
    %v166 = vpow.pop %v165
    %v167 = vadd.f32 %v166, 1.0
    %v168 = vrcp.pop %v167
    %v169 = vmul.f32 1.0, %v168
    %v170 = vld [vmem:[#allocation7] sm:$0xff]
    %v171 = vld [vmem:[#allocation7 + $0x8] sm:$0xff]
    %v172 = vld [vmem:[#allocation7 + $0x10] sm:$0xff]
    %v173 = vld [vmem:[#allocation7 + $0x18] sm:$0xff]
    %v174 = vld [vmem:[#allocation7 + $0x20] sm:$0xff]
    %v175 = vld [vmem:[#allocation7 + $0x28] sm:$0xff]
    %v176 = vld [vmem:[#allocation7 + $0x30] sm:$0xff]
    %v177 = vld [vmem:[#allocation7 + $0x38] sm:$0xff]
    %v178 = vld [vmem:[#allocation7 + $0x40] sm:$0xff]
    %v179 = vld [vmem:[#allocation7 + $0x48] sm:$0xff]
    %v180 = vld [vmem:[#allocation7 + $0x50] sm:$0xff]
    %v181 = vld [vmem:[#allocation7 + $0x58] sm:$0xff]
    %v182 = vld [vmem:[#allocation7 + $0x60] sm:$0xff]
    %v183 = vld [vmem:[#allocation7 + $0x68] sm:$0xff]
    %v184 = vld [vmem:[#allocation7 + $0x70] sm:$0xff]
    %v185 = vld [vmem:[#allocation7 + $0x78] sm:$0xff]
    %v186 = vld [vmem:[%s4] sm:$0x1]
    %v188 = vlaneseq
    %v189 = vshrl.u32 %v188, 7
    %v190 = vsub.s32 0, %v189
    %v191 = vrot.slane %v186, %v190
    %193 = vmatprep.subr.mxu0 0.0
    %194 = vmatpush1.msra.mxu0 %v170
    %195 = vmatprep.subr.mxu0 0.0
    %196 = vmatpush1.msra.mxu0 %v171
    %197 = vmatprep.subr.mxu0 0.0
    %198 = vmatpush1.msra.mxu0 %v172
    %199 = vmatprep.subr.mxu0 0.0
    %200 = vmatpush1.msra.mxu0 %v173
    %201 = vmatprep.subr.mxu0 0.0
    %202 = vmatpush1.msra.mxu0 %v174
    %203 = vmatprep.subr.mxu0 0.0
    %204 = vmatpush1.msra.mxu0 %v175
    %205 = vmatprep.subr.mxu0 0.0
    %206 = vmatpush1.msra.mxu0 %v176
    %207 = vmatprep.subr.mxu0 0.0
    %208 = vmatpush1.msra.mxu0 %v177
    %209 = vmatprep.subr.mxu0 0.0
    %210 = vmatpush1.msra.mxu0 %v178
    %211 = vmatprep.subr.mxu0 0.0
    %212 = vmatpush1.msra.mxu0 %v179
    %213 = vmatprep.subr.mxu0 0.0
    %214 = vmatpush1.msra.mxu0 %v180
    %215 = vmatprep.subr.mxu0 0.0
    %216 = vmatpush1.msra.mxu0 %v181
    %217 = vmatprep.subr.mxu0 0.0
    %218 = vmatpush1.msra.mxu0 %v182
    %219 = vmatprep.subr.mxu0 0.0
    %220 = vmatpush1.msra.mxu0 %v183
    %221 = vmatprep.subr.mxu0 0.0
    %222 = vmatpush1.msra.mxu0 %v184
    %223 = vmatprep.subr.mxu0 0.0
    %224 = vmatpush1.msra.mxu0 %v185
    %225 = vmatprep.subr.mxu0 0.0
    %226 = vmatpush1.msra.mxu0 0.0
    %227 = vmatprep.subr.mxu0 0.0
    %228 = vmatpush1.msra.mxu0 0.0
    %229 = vmatprep.subr.mxu0 0.0
    %230 = vmatpush1.msra.mxu0 0.0
    %231 = vmatprep.subr.mxu0 0.0
    %232 = vmatpush1.msra.mxu0 0.0
    %233 = vmatprep.subr.mxu0 0.0
    %234 = vmatpush1.msra.mxu0 0.0
    %235 = vmatprep.subr.mxu0 0.0
    %236 = vmatpush1.msra.mxu0 0.0
    %237 = vmatprep.subr.mxu0 0.0
    %238 = vmatpush1.msra.mxu0 0.0
    %239 = vmatprep.subr.mxu0 0.0
    %240 = vmatpush1.msra.mxu0 0.0
    %241 = vmatprep.subr.mxu0 0.0
    %242 = vmatpush1.msra.mxu0 0.0
    %243 = vmatprep.subr.mxu0 0.0
    %244 = vmatpush1.msra.mxu0 0.0
    %245 = vmatprep.subr.mxu0 0.0
    %246 = vmatpush1.msra.mxu0 0.0
    %247 = vmatprep.subr.mxu0 0.0
    %248 = vmatpush1.msra.mxu0 0.0
    %249 = vmatprep.subr.mxu0 0.0
    %250 = vmatpush1.msra.mxu0 0.0
    %251 = vmatprep.subr.mxu0 0.0
    %252 = vmatpush1.msra.mxu0 0.0
    %253 = vmatprep.subr.mxu0 0.0
    %254 = vmatpush1.msra.mxu0 0.0
    %255 = vmatprep.subr.mxu0 0.0
    %256 = vmatpush1.msra.mxu0 0.0
    %257 = vmatprep.mubr.f32.mxu0 0.0
    %258 = vmatmul.mubr.f32.gmra.mrb[0].mxu0 %v169
    %v259 = vpop.f32.mrb[0].mxu0
    %v260 = vadd.f32 %v191, %v259
    %v261 = vpop.f32.mrb[0].mxu0
    %262 = vdwg.mxu0
    %v263 = vxor.u32 %v260, 2147483648
    %v264 = vmul.f32 %v263, 1.442695
    %v265 = vpow.pop %v264
    %v266 = vadd.f32 %v265, 1.0
    %v267 = vrcp.pop %v266
    %v268 = vmul.f32 1.0, %v267
    %v269 = vld [vmem:[#allocation8] sm:$0xff]
    %v270 = vld [vmem:[#allocation8 + $0x8] sm:$0xff]
    %v271 = vld [vmem:[#allocation8 + $0x10] sm:$0xff]
    %v272 = vld [vmem:[#allocation8 + $0x18] sm:$0xff]
    %v273 = vld [vmem:[#allocation8 + $0x20] sm:$0xff]
    %v274 = vld [vmem:[#allocation8 + $0x28] sm:$0xff]
    %v275 = vld [vmem:[#allocation8 + $0x30] sm:$0xff]
    %v276 = vld [vmem:[#allocation8 + $0x38] sm:$0xff]
    %v277 = vld [vmem:[#allocation8 + $0x40] sm:$0xff]
    %v278 = vld [vmem:[#allocation8 + $0x48] sm:$0xff]
    %v279 = vld [vmem:[#allocation8 + $0x50] sm:$0xff]
    %v280 = vld [vmem:[#allocation8 + $0x58] sm:$0xff]
    %v281 = vld [vmem:[#allocation8 + $0x60] sm:$0xff]
    %v282 = vld [vmem:[#allocation8 + $0x68] sm:$0xff]
    %v283 = vld [vmem:[#allocation8 + $0x70] sm:$0xff]
    %v284 = vld [vmem:[#allocation8 + $0x78] sm:$0xff]
    %v285 = vld [vmem:[%s6] sm:$0x1]
    %v287 = vlaneseq
    %v288 = vshrl.u32 %v287, 7
    %v289 = vsub.s32 0, %v288
    %v290 = vrot.slane %v285, %v289
    %292 = vmatprep.subr.mxu0 0.0
    %293 = vmatpush1.msra.mxu0 %v269
    %294 = vmatprep.subr.mxu0 0.0
    %295 = vmatpush1.msra.mxu0 %v270
    %296 = vmatprep.subr.mxu0 0.0
    %297 = vmatpush1.msra.mxu0 %v271
    %298 = vmatprep.subr.mxu0 0.0
    %299 = vmatpush1.msra.mxu0 %v272
    %300 = vmatprep.subr.mxu0 0.0
    %301 = vmatpush1.msra.mxu0 %v273
    %302 = vmatprep.subr.mxu0 0.0
    %303 = vmatpush1.msra.mxu0 %v274
    %304 = vmatprep.subr.mxu0 0.0
    %305 = vmatpush1.msra.mxu0 %v275
    %306 = vmatprep.subr.mxu0 0.0
    %307 = vmatpush1.msra.mxu0 %v276
    %308 = vmatprep.subr.mxu0 0.0
    %309 = vmatpush1.msra.mxu0 %v277
    %310 = vmatprep.subr.mxu0 0.0
    %311 = vmatpush1.msra.mxu0 %v278
    %312 = vmatprep.subr.mxu0 0.0
    %313 = vmatpush1.msra.mxu0 %v279
    %314 = vmatprep.subr.mxu0 0.0
    %315 = vmatpush1.msra.mxu0 %v280
    %316 = vmatprep.subr.mxu0 0.0
    %317 = vmatpush1.msra.mxu0 %v281
    %318 = vmatprep.subr.mxu0 0.0
    %319 = vmatpush1.msra.mxu0 %v282
    %320 = vmatprep.subr.mxu0 0.0
    %321 = vmatpush1.msra.mxu0 %v283
    %322 = vmatprep.subr.mxu0 0.0
    %323 = vmatpush1.msra.mxu0 %v284
    %324 = vmatprep.subr.mxu0 0.0
    %325 = vmatpush1.msra.mxu0 0.0
    %326 = vmatprep.subr.mxu0 0.0
    %327 = vmatpush1.msra.mxu0 0.0
    %328 = vmatprep.subr.mxu0 0.0
    %329 = vmatpush1.msra.mxu0 0.0
    %330 = vmatprep.subr.mxu0 0.0
    %331 = vmatpush1.msra.mxu0 0.0
    %332 = vmatprep.subr.mxu0 0.0
    %333 = vmatpush1.msra.mxu0 0.0
    %334 = vmatprep.subr.mxu0 0.0
    %335 = vmatpush1.msra.mxu0 0.0
    %336 = vmatprep.subr.mxu0 0.0
    %337 = vmatpush1.msra.mxu0 0.0
    %338 = vmatprep.subr.mxu0 0.0
    %339 = vmatpush1.msra.mxu0 0.0
    %340 = vmatprep.subr.mxu0 0.0
    %341 = vmatpush1.msra.mxu0 0.0
    %342 = vmatprep.subr.mxu0 0.0
    %343 = vmatpush1.msra.mxu0 0.0
    %344 = vmatprep.subr.mxu0 0.0
    %345 = vmatpush1.msra.mxu0 0.0
    %346 = vmatprep.subr.mxu0 0.0
    %347 = vmatpush1.msra.mxu0 0.0
    %348 = vmatprep.subr.mxu0 0.0
    %349 = vmatpush1.msra.mxu0 0.0
    %350 = vmatprep.subr.mxu0 0.0
    %351 = vmatpush1.msra.mxu0 0.0
    %352 = vmatprep.subr.mxu0 0.0
    %353 = vmatpush1.msra.mxu0 0.0
    %354 = vmatprep.subr.mxu0 0.0
    %355 = vmatpush1.msra.mxu0 0.0
    %356 = vmatprep.mubr.f32.mxu0 0.0
    %357 = vmatmul.mubr.f32.gmra.mrb[0].mxu0 %v268
    %v358 = vpop.f32.mrb[0].mxu0
    %v359 = vadd.f32 %v290, %v358
    %v360 = vpop.f32.mrb[0].mxu0
    %361 = vdwg.mxu0
    %362 = vmax.xlane.f32.xlu0 %v359
    %v363 = vpop.xlane.xlu0 %362
    %v364 = vsub.f32 %v359, %v363
    %v365 = vmul.f32 %v364, 1.442695
    %v366 = vpow.pop %v365
    %367 = vadd.xlane.f32.xlu0 %v366
    %v368 = vpop.xlane.xlu0 %367
    %v369 = vlog2.pop %v368
    %v370 = vmul.f32 %v369, 0.6931472
    %v371 = vsub.f32 %v364, %v370
    %372 = vst [vmem:[#allocation10] sm:$0xff] %v371
    // Predicated region
    $region46: #{tpu_custom_call.1} parent=1 // pred_check
      _
    $region47: #{tpu_custom_call.1} parent=1 // pred_check_branch
      %374 = sbr.rel (0) target = $region49
    $region48: #{tpu_custom_call.1} parent=1 // pred_region
      %s376 = ssub.s32 128, 128
      %377 = vsyncadd [#allocation4], %s376
      %s379 = sshll.u32 [#allocation10], 4
      %s380 = int_to_ptr.vmem [resolvable:$true] %s379
      %382 = dma.vmem_to_hbm [thread:$0]  %s380, 128, %s7, [#allocation4]
    $region49: #{tpu_custom_call.1} parent=1 // pred_fallthru
      _
    // Predicated region
    $region50: #{tpu_custom_call.1} parent=1 // pred_check
      _
    $region51: #{tpu_custom_call.1} parent=1 // pred_check_branch
      %384 = sbr.rel (0) target = $region53
    $region52: #{tpu_custom_call.1} parent=1 // pred_region
      %385 = dma.done [#allocation4], 128
    $region53: #{tpu_custom_call.1} parent=1 // pred_fallthru
      _
    %386 = vsyncpa [#allocation3], 1
    %387 = vsyncpa [#allocation6], 1
    %388 = vsyncpa [#allocation9], 1
    %389 = vsyncpa [#allocation4], 1

</llo_original>
